<compile_context>
chip_gen: v5e
topology: v5e:2x2
jax: 0.10.0
libtpu: 0.0.40
codegen_flags: <defaults>
</compile_context>

<pallas_src>
import jax
import jax.numpy as jnp
from jax.experimental import pallas as pl
from jax.experimental.pallas import tpu as pltpu

EMB_DIM = 32
VOCAB_SIZE = 16
SEQ_LEN = 8


def decoder_step_kernel(tok_ref, h_ref, enc_ref, emb_ref,
                        wh_att_ref, we_att_ref, b_att_ref, v_att_ref,
                        w_comb_ref, b_comb_ref,
                        w_gru_ref, b_gru_ref,
                        w_out_ref, b_out_ref,
                        logp_ref, h_new_ref,
                        cat_ref):
    D = EMB_DIM
    tok = tok_ref[0]                              # scalar token id (SMEM)
    h = h_ref[...]                                # (1, D)
    enc = enc_ref[...]                            # (S, D)

    # --- embedding lookup, fused in-kernel (one-hot row gather on the MXU) ---
    vocab_iota = jax.lax.broadcasted_iota(jnp.int32, (1, VOCAB_SIZE), 1)
    onehot = (vocab_iota == tok).astype(jnp.float32)                     # (1, V)
    emb = jnp.dot(onehot, emb_ref[...], preferred_element_type=jnp.float32)  # (1, D)
    # TODO(synk): nn.Dropout(p=0.1) implemented as eval-mode identity (no RNG).

    # --- attention:  alpha = tanh([h; enc_s] @ W_att^T + b),  e = alpha @ v ---
    h_proj = jnp.dot(h, wh_att_ref[...], preferred_element_type=jnp.float32)    # (1, D)
    e_proj = jnp.dot(enc, we_att_ref[...], preferred_element_type=jnp.float32)  # (S, D)
    alpha = jnp.tanh(h_proj + e_proj + b_att_ref[...])                          # (S, D)
    scores = jnp.sum(alpha * v_att_ref[...], axis=1, keepdims=True)             # (S, 1)
    m = jnp.max(scores, axis=0, keepdims=True)
    p = jnp.exp(scores - m)
    attw = p / jnp.sum(p, axis=0, keepdims=True)                                # (S, 1) softmax
    att_dp = jnp.sum(attw * enc, axis=0, keepdims=True)                         # (1, D)

    # --- attn_combine + ReLU :  relu([emb | att_dp] @ W_comb^T + b_comb) ---
    cat_ref[:, 0:D] = emb
    cat_ref[:, D:2 * D] = att_dp
    comb = jnp.dot(cat_ref[...], w_comb_ref[...],
                   preferred_element_type=jnp.float32) + b_comb_ref[...]        # (1, D)
    x = jnp.maximum(comb, 0.0)

    # --- GRU: all gates in ONE (1,2D) x (2D,4D) MXU pass, cols = [r|z|i_n|h_n] ---
    cat_ref[:, 0:D] = x
    cat_ref[:, D:2 * D] = h
    gates = jnp.dot(cat_ref[...], w_gru_ref[...],
                    preferred_element_type=jnp.float32) + b_gru_ref[...]        # (1, 4D)
    r = jax.nn.sigmoid(gates[:, 0:D])
    z = jax.nn.sigmoid(gates[:, D:2 * D])
    i_n = gates[:, 2 * D:3 * D]
    h_n = gates[:, 3 * D:4 * D]
    n = jnp.tanh(i_n + r * h_n)
    h_new = (1.0 - z) * n + z * h
    h_new_ref[...] = h_new

    # --- output projection + log_softmax over the vocab ---
    logits = jnp.dot(h_new, w_out_ref[...],
                     preferred_element_type=jnp.float32) + b_out_ref[...]       # (1, V)
    lmax = jnp.max(logits, axis=1, keepdims=True)
    shifted = logits - lmax
    lse = jnp.log(jnp.sum(jnp.exp(shifted), axis=1, keepdims=True))
    logp_ref[...] = shifted - lse


def init_raw_params(key):
    """PyTorch-layout parameters for DecoderRNN (+Attention)."""
    D, V = EMB_DIM, VOCAB_SIZE
    ks = jax.random.split(key, 12)
    s2 = 1.0 / jnp.sqrt(2.0 * D)
    s1 = 1.0 / jnp.sqrt(1.0 * D)
    emb_table = jax.random.normal(ks[0], (V, D), jnp.float32)
    v_att = jax.random.uniform(ks[1], (D,), jnp.float32)                       # torch.rand
    W_att = jax.random.uniform(ks[2], (D, 2 * D), jnp.float32, -s2, s2)        # att_para
    b_att = jax.random.uniform(ks[3], (D,), jnp.float32, -s2, s2)
    W_comb = jax.random.uniform(ks[4], (D, 2 * D), jnp.float32, -s2, s2)       # attn_combine
    b_comb = jax.random.uniform(ks[5], (D,), jnp.float32, -s2, s2)
    W_ih = jax.random.uniform(ks[6], (3 * D, D), jnp.float32, -s1, s1)         # GRU, gates [r,z,n]
    W_hh = jax.random.uniform(ks[7], (3 * D, D), jnp.float32, -s1, s1)
    b_ih = jax.random.uniform(ks[8], (3 * D,), jnp.float32, -s1, s1)
    b_hh = jax.random.uniform(ks[9], (3 * D,), jnp.float32, -s1, s1)
    W_out = jax.random.uniform(ks[10], (V, D), jnp.float32, -s1, s1)           # out
    b_out = jax.random.uniform(ks[11], (V,), jnp.float32, -s1, s1)
    return (emb_table, v_att, W_att, b_att, W_comb, b_comb,
            W_ih, W_hh, b_ih, b_hh, W_out, b_out)


def pack_params(raw):
    """Repack PyTorch-layout params into lane-dense kernel slabs."""
    (emb_table, v_att, W_att, b_att, W_comb, b_comb,
     W_ih, W_hh, b_ih, b_hh, W_out, b_out) = raw
    D, V = EMB_DIM, VOCAB_SIZE

    wh_att = W_att[:, :D].T                        # (D, D): h @ wh_att
    we_att = W_att[:, D:].T                        # (D, D): enc @ we_att
    b_att2 = b_att.reshape(1, D)
    v_att2 = v_att.reshape(1, D)

    w_comb_t = W_comb.T                            # (2D, D): [emb|att_dp] @ w_comb_t
    b_comb2 = b_comb.reshape(1, D)

    # Fused GRU slab (2D, 4D); gate order in W_ih / W_hh is [r, z, n].
    Wi = W_ih.reshape(3, D, D)
    Wh = W_hh.reshape(3, D, D)
    zeros = jnp.zeros((D, D), jnp.float32)
    col_r = jnp.concatenate([Wi[0].T, Wh[0].T], axis=0)      # (2D, D)
    col_z = jnp.concatenate([Wi[1].T, Wh[1].T], axis=0)
    col_in = jnp.concatenate([Wi[2].T, zeros], axis=0)       # x-part only
    col_hn = jnp.concatenate([zeros, Wh[2].T], axis=0)       # h-part only
    w_gru = jnp.concatenate([col_r, col_z, col_in, col_hn], axis=1)   # (2D, 4D)
    bi = b_ih.reshape(3, D)
    bh = b_hh.reshape(3, D)
    b_gru = jnp.concatenate([bi[0] + bh[0], bi[1] + bh[1], bi[2], bh[2]]).reshape(1, 4 * D)

    w_out_t = W_out.T                              # (D, V)
    b_out2 = b_out.reshape(1, V)
    return (emb_table, wh_att, we_att, b_att2, v_att2,
            w_comb_t, b_comb2, w_gru, b_gru, w_out_t, b_out2)


def decoder_forward(token_id, hidden, encoder_outputs, packed):
    """Mirrors DecoderRNN.forward(input, hidden, encoder_outputs)."""
    D, V = EMB_DIM, VOCAB_SIZE
    tok = jnp.asarray(token_id, jnp.int32).reshape(1)
    h = hidden.reshape(1, D).astype(jnp.float32)
    enc = encoder_outputs.astype(jnp.float32)

    vmem = pl.BlockSpec(memory_space=pltpu.MemorySpace.VMEM)
    smem = pl.BlockSpec(memory_space=pltpu.MemorySpace.SMEM)
    logp, h_new = pl.pallas_call(
        decoder_step_kernel,
        out_shape=(jax.ShapeDtypeStruct((1, V), jnp.float32),
                   jax.ShapeDtypeStruct((1, D), jnp.float32)),
        in_specs=[smem, vmem, vmem] + [vmem] * 11,
        out_specs=(vmem, vmem),
        scratch_shapes=[pltpu.VMEM((1, 2 * D), jnp.float32)],
    )(tok, h, enc, *packed)
    return logp, h_new.reshape(1, 1, D)


def _reference(token_id, hidden, enc, raw):
    """Pure-JAX reference with PyTorch semantics (eval mode)."""
    (emb_table, v_att, W_att, b_att, W_comb, b_comb,
     W_ih, W_hh, b_ih, b_hh, W_out, b_out) = raw
    D = EMB_DIM
    hp = jax.lax.Precision.HIGHEST
    S = enc.shape[0]
    x = emb_table[token_id].reshape(1, D)
    h = hidden.reshape(1, D)

    hid_rep = jnp.broadcast_to(h, (S, D))
    cat = jnp.concatenate([hid_rep, enc], axis=1)                    # (S, 2D)
    alpha = jnp.tanh(jnp.dot(cat, W_att.T, precision=hp) + b_att)    # (S, D)
    e = jnp.dot(alpha, v_att, precision=hp)                          # (S,)
    w = jax.nn.softmax(e)
    att_dp = jnp.sum(w[:, None] * enc, axis=0, keepdims=True)        # (1, D)

    comb = jnp.dot(jnp.concatenate([x, att_dp], axis=1), W_comb.T, precision=hp) + b_comb
    gx = jax.nn.relu(comb)

    gi = jnp.dot(gx, W_ih.T, precision=hp) + b_ih
    gh = jnp.dot(h, W_hh.T, precision=hp) + b_hh
    i_r, i_z, i_n = gi[:, :D], gi[:, D:2 * D], gi[:, 2 * D:]
    h_r, h_z, h_n = gh[:, :D], gh[:, D:2 * D], gh[:, 2 * D:]
    r = jax.nn.sigmoid(i_r + h_r)
    z = jax.nn.sigmoid(i_z + h_z)
    n = jnp.tanh(i_n + r * h_n)
    h_new = (1.0 - z) * n + z * h

    logits = jnp.dot(h_new, W_out.T, precision=hp) + b_out
    logp = jax.nn.log_softmax(logits, axis=1)
    return logp, h_new.reshape(1, 1, D)


if __name__ == "__main__":
    key = jax.random.PRNGKey(0)
    k_params, k_hidden, k_enc = jax.random.split(key, 3)

    raw = init_raw_params(k_params)
    packed = pack_params(raw)

    token_id = jnp.array(3, dtype=jnp.int32)                              # input: [idx]
    hidden = 0.1 * jax.random.normal(k_hidden, (1, 1, EMB_DIM), jnp.float32)
    encoder_outputs = 0.1 * jax.random.normal(k_enc, (SEQ_LEN, EMB_DIM), jnp.float32)

    logp, h_new = decoder_forward(token_id, hidden, encoder_outputs, packed)
    jax.block_until_ready((logp, h_new))

    ref_logp, ref_h = _reference(token_id, hidden, encoder_outputs, raw)
    assert logp.shape == (1, VOCAB_SIZE) and h_new.shape == (1, 1, EMB_DIM)
    assert jnp.allclose(logp, ref_logp, atol=1e-4, rtol=1e-4), \
        f"logp max err {float(jnp.max(jnp.abs(logp - ref_logp)))}"
    assert jnp.allclose(h_new, ref_h, atol=1e-4, rtol=1e-4), \
        f"hidden max err {float(jnp.max(jnp.abs(h_new - ref_h)))}"

    print("KERNEL_OK")
</pallas_src>

<mosaic_0001>
module attributes {stable_mosaic.version = 11 : i64} {
  func.func @decoder_step_kernel(%arg0: memref<1xi32, #tpu.memory_space<smem>>, %arg1: memref<1x32xf32, #tpu.memory_space<vmem>>, %arg2: memref<8x32xf32, #tpu.memory_space<vmem>>, %arg3: memref<16x32xf32, #tpu.memory_space<vmem>>, %arg4: memref<32x32xf32, #tpu.memory_space<vmem>>, %arg5: memref<32x32xf32, #tpu.memory_space<vmem>>, %arg6: memref<1x32xf32, #tpu.memory_space<vmem>>, %arg7: memref<1x32xf32, #tpu.memory_space<vmem>>, %arg8: memref<64x32xf32, #tpu.memory_space<vmem>>, %arg9: memref<1x32xf32, #tpu.memory_space<vmem>>, %arg10: memref<64x128xf32, #tpu.memory_space<vmem>>, %arg11: memref<1x128xf32, #tpu.memory_space<vmem>>, %arg12: memref<32x16xf32, #tpu.memory_space<vmem>>, %arg13: memref<1x16xf32, #tpu.memory_space<vmem>>, %arg14: memref<1x16xf32, #tpu.memory_space<vmem>>, %arg15: memref<1x32xf32, #tpu.memory_space<vmem>>, %arg16: memref<1x64xf32, #tpu.memory_space<vmem>>) attributes {dimension_semantics = [], scalar_prefetch = 0 : i64, scratch_operands = 1 : i64, tpu.core_type = #tpu.core_type<tc>} {
    %c0 = arith.constant 0 : index
    %0 = memref.load %arg0[%c0] : memref<1xi32, #tpu.memory_space<smem>>
    %c0_0 = arith.constant 0 : index
    %c0_1 = arith.constant 0 : index
    %1 = vector.load %arg1[%c0_0, %c0_1] : memref<1x32xf32, #tpu.memory_space<vmem>>, vector<1x32xf32>
    %c0_2 = arith.constant 0 : index
    %c0_3 = arith.constant 0 : index
    %2 = vector.load %arg2[%c0_2, %c0_3] : memref<8x32xf32, #tpu.memory_space<vmem>>, vector<8x32xf32>
    %3 = tpu.iota {dimensions = array<i32: 1>} : vector<1x16xi32>
    %4 = vector.broadcast %0 : i32 to vector<1x16xi32>
    %5 = arith.cmpi eq, %3, %4 : vector<1x16xi32>
    %6 = arith.extui %5 : vector<1x16xi1> to vector<1x16xi32>
    %7 = arith.sitofp %6 : vector<1x16xi32> to vector<1x16xf32>
    %c0_4 = arith.constant 0 : index
    %c0_5 = arith.constant 0 : index
    %8 = vector.load %arg3[%c0_4, %c0_5] : memref<16x32xf32, #tpu.memory_space<vmem>>, vector<16x32xf32>
    %cst = arith.constant dense<0.000000e+00> : vector<1x32xf32>
    %9 = tpu.matmul %7, %8, %cst {dimension_numbers = #tpu.dot_dimension_numbers<[1], [0], [0], [1], [0, 0, 1, 1], [], []>} : vector<1x16xf32>, vector<16x32xf32>, vector<1x32xf32> -> vector<1x32xf32>
    %c0_6 = arith.constant 0 : index
    %c0_7 = arith.constant 0 : index
    %10 = vector.load %arg4[%c0_6, %c0_7] : memref<32x32xf32, #tpu.memory_space<vmem>>, vector<32x32xf32>
    %cst_8 = arith.constant dense<0.000000e+00> : vector<1x32xf32>
    %11 = tpu.matmul %1, %10, %cst_8 {dimension_numbers = #tpu.dot_dimension_numbers<[1], [0], [0], [1], [0, 0, 1, 1], [], []>} : vector<1x32xf32>, vector<32x32xf32>, vector<1x32xf32> -> vector<1x32xf32>
    %c0_9 = arith.constant 0 : index
    %c0_10 = arith.constant 0 : index
    %12 = vector.load %arg5[%c0_9, %c0_10] : memref<32x32xf32, #tpu.memory_space<vmem>>, vector<32x32xf32>
    %cst_11 = arith.constant dense<0.000000e+00> : vector<8x32xf32>
    %13 = tpu.matmul %2, %12, %cst_11 {dimension_numbers = #tpu.dot_dimension_numbers<[1], [0], [0], [1], [0, 0, 1, 1], [], []>} : vector<8x32xf32>, vector<32x32xf32>, vector<8x32xf32> -> vector<8x32xf32>
    %14 = vector.broadcast %11 : vector<1x32xf32> to vector<8x32xf32>
    %15 = arith.addf %14, %13 : vector<8x32xf32>
    %c0_12 = arith.constant 0 : index
    %c0_13 = arith.constant 0 : index
    %16 = vector.load %arg6[%c0_12, %c0_13] : memref<1x32xf32, #tpu.memory_space<vmem>>, vector<1x32xf32>
    %17 = vector.broadcast %16 : vector<1x32xf32> to vector<8x32xf32>
    %18 = arith.addf %15, %17 : vector<8x32xf32>
    %19 = math.tanh %18 : vector<8x32xf32>
    %c0_14 = arith.constant 0 : index
    %c0_15 = arith.constant 0 : index
    %20 = vector.load %arg7[%c0_14, %c0_15] : memref<1x32xf32, #tpu.memory_space<vmem>>, vector<1x32xf32>
    %21 = vector.broadcast %20 : vector<1x32xf32> to vector<8x32xf32>
    %22 = arith.mulf %19, %21 : vector<8x32xf32>
    %cst_16 = arith.constant dense<0.000000e+00> : vector<8xf32>
    %23 = vector.multi_reduction <add>, %22, %cst_16 [1] : vector<8x32xf32> to vector<8xf32>
    %24 = vector.shape_cast %23 : vector<8xf32> to vector<8x1xf32>
    %cst_17 = arith.constant dense<0xFF800000> : vector<1xf32>
    %25 = vector.multi_reduction <maximumf>, %24, %cst_17 [0] : vector<8x1xf32> to vector<1xf32>
    %26 = vector.shape_cast %25 : vector<1xf32> to vector<1x1xf32>
    %27 = vector.broadcast %26 : vector<1x1xf32> to vector<8x1xf32>
    %28 = arith.subf %24, %27 : vector<8x1xf32>
    %29 = math.exp %28 : vector<8x1xf32>
    %cst_18 = arith.constant dense<0.000000e+00> : vector<1xf32>
    %30 = vector.multi_reduction <add>, %29, %cst_18 [0] : vector<8x1xf32> to vector<1xf32>
    %31 = vector.shape_cast %30 : vector<1xf32> to vector<1x1xf32>
    %32 = vector.broadcast %31 : vector<1x1xf32> to vector<8x1xf32>
    %33 = arith.divf %29, %32 : vector<8x1xf32>
    %34 = vector.broadcast %33 : vector<8x1xf32> to vector<8x32xf32>
    %35 = arith.mulf %34, %2 : vector<8x32xf32>
    %cst_19 = arith.constant dense<0.000000e+00> : vector<32xf32>
    %36 = vector.multi_reduction <add>, %35, %cst_19 [0] : vector<8x32xf32> to vector<32xf32>
    %37 = vector.shape_cast %36 : vector<32xf32> to vector<1x32xf32>
    %c0_20 = arith.constant 0 : index
    %c0_21 = arith.constant 0 : index
    %38 = vector.load %arg16[%c0_20, %c0_21] : memref<1x64xf32, #tpu.memory_space<vmem>>, vector<1x32xf32>
    tpu.vector_store %arg16[%c0_20, %c0_21], %9 {strides = array<i32>} : memref<1x64xf32, #tpu.memory_space<vmem>>, vector<1x32xf32>,
    %c0_22 = arith.constant 0 : index
    %c32 = arith.constant 32 : index
    %39 = vector.load %arg16[%c0_22, %c32] : memref<1x64xf32, #tpu.memory_space<vmem>>, vector<1x32xf32>
    tpu.vector_store %arg16[%c0_22, %c32], %37 {strides = array<i32>} : memref<1x64xf32, #tpu.memory_space<vmem>>, vector<1x32xf32>,
    %c0_23 = arith.constant 0 : index
    %c0_24 = arith.constant 0 : index
    %40 = vector.load %arg16[%c0_23, %c0_24] : memref<1x64xf32, #tpu.memory_space<vmem>>, vector<1x64xf32>
    %c0_25 = arith.constant 0 : index
    %c0_26 = arith.constant 0 : index
    %41 = vector.load %arg8[%c0_25, %c0_26] : memref<64x32xf32, #tpu.memory_space<vmem>>, vector<64x32xf32>
    %cst_27 = arith.constant dense<0.000000e+00> : vector<1x32xf32>
    %42 = tpu.matmul %40, %41, %cst_27 {dimension_numbers = #tpu.dot_dimension_numbers<[1], [0], [0], [1], [0, 0, 1, 1], [], []>} : vector<1x64xf32>, vector<64x32xf32>, vector<1x32xf32> -> vector<1x32xf32>
    %c0_28 = arith.constant 0 : index
    %c0_29 = arith.constant 0 : index
    %43 = vector.load %arg9[%c0_28, %c0_29] : memref<1x32xf32, #tpu.memory_space<vmem>>, vector<1x32xf32>
    %44 = arith.addf %42, %43 : vector<1x32xf32>
    %cst_30 = arith.constant 0.000000e+00 : f32
    %45 = vector.broadcast %cst_30 : f32 to vector<1x32xf32>
    %46 = arith.maximumf %44, %45 : vector<1x32xf32>
    %c0_31 = arith.constant 0 : index
    %c0_32 = arith.constant 0 : index
    %47 = vector.load %arg16[%c0_31, %c0_32] : memref<1x64xf32, #tpu.memory_space<vmem>>, vector<1x32xf32>
    tpu.vector_store %arg16[%c0_31, %c0_32], %46 {strides = array<i32>} : memref<1x64xf32, #tpu.memory_space<vmem>>, vector<1x32xf32>,
    %c0_33 = arith.constant 0 : index
    %c32_34 = arith.constant 32 : index
    %48 = vector.load %arg16[%c0_33, %c32_34] : memref<1x64xf32, #tpu.memory_space<vmem>>, vector<1x32xf32>
    tpu.vector_store %arg16[%c0_33, %c32_34], %1 {strides = array<i32>} : memref<1x64xf32, #tpu.memory_space<vmem>>, vector<1x32xf32>,
    %c0_35 = arith.constant 0 : index
    %c0_36 = arith.constant 0 : index
    %49 = vector.load %arg16[%c0_35, %c0_36] : memref<1x64xf32, #tpu.memory_space<vmem>>, vector<1x64xf32>
    %c0_37 = arith.constant 0 : index
    %c0_38 = arith.constant 0 : index
    %50 = vector.load %arg10[%c0_37, %c0_38] : memref<64x128xf32, #tpu.memory_space<vmem>>, vector<64x128xf32>
    %cst_39 = arith.constant dense<0.000000e+00> : vector<1x128xf32>
    %51 = tpu.matmul %49, %50, %cst_39 {dimension_numbers = #tpu.dot_dimension_numbers<[1], [0], [0], [1], [0, 0, 1, 1], [], []>} : vector<1x64xf32>, vector<64x128xf32>, vector<1x128xf32> -> vector<1x128xf32>
    %c0_40 = arith.constant 0 : index
    %c0_41 = arith.constant 0 : index
    %52 = vector.load %arg11[%c0_40, %c0_41] : memref<1x128xf32, #tpu.memory_space<vmem>>, vector<1x128xf32>
    %53 = arith.addf %51, %52 : vector<1x128xf32>
    %54 = vector.extract_strided_slice %53 {offsets = [0, 0], sizes = [1, 32], strides = [1, 1]} : vector<1x128xf32> to vector<1x32xf32>
    %55 = arith.negf %54 : vector<1x32xf32>
    %56 = math.exp %55 : vector<1x32xf32>
    %cst_42 = arith.constant 1.000000e+00 : f32
    %57 = vector.broadcast %cst_42 : f32 to vector<1x32xf32>
    %58 = arith.addf %57, %56 : vector<1x32xf32>
    %59 = arith.divf %57, %58 : vector<1x32xf32>
    %60 = vector.extract_strided_slice %53 {offsets = [0, 32], sizes = [1, 32], strides = [1, 1]} : vector<1x128xf32> to vector<1x32xf32>
    %61 = arith.negf %60 : vector<1x32xf32>
    %62 = math.exp %61 : vector<1x32xf32>
    %cst_43 = arith.constant 1.000000e+00 : f32
    %63 = vector.broadcast %cst_43 : f32 to vector<1x32xf32>
    %64 = arith.addf %63, %62 : vector<1x32xf32>
    %65 = arith.divf %63, %64 : vector<1x32xf32>
    %66 = vector.extract_strided_slice %53 {offsets = [0, 64], sizes = [1, 32], strides = [1, 1]} : vector<1x128xf32> to vector<1x32xf32>
    %67 = vector.extract_strided_slice %53 {offsets = [0, 96], sizes = [1, 32], strides = [1, 1]} : vector<1x128xf32> to vector<1x32xf32>
    %68 = arith.mulf %59, %67 : vector<1x32xf32>
    %69 = arith.addf %66, %68 : vector<1x32xf32>
    %70 = math.tanh %69 : vector<1x32xf32>
    %cst_44 = arith.constant 1.000000e+00 : f32
    %71 = vector.broadcast %cst_44 : f32 to vector<1x32xf32>
    %72 = arith.subf %71, %65 : vector<1x32xf32>
    %73 = arith.mulf %72, %70 : vector<1x32xf32>
    %74 = arith.mulf %65, %1 : vector<1x32xf32>
    %75 = arith.addf %73, %74 : vector<1x32xf32>
    %c0_45 = arith.constant 0 : index
    %c0_46 = arith.constant 0 : index
    %76 = vector.load %arg15[%c0_45, %c0_46] : memref<1x32xf32, #tpu.memory_space<vmem>>, vector<1x32xf32>
    tpu.vector_store %arg15[%c0_45, %c0_46], %75 {strides = array<i32>} : memref<1x32xf32, #tpu.memory_space<vmem>>, vector<1x32xf32>,
    %c0_47 = arith.constant 0 : index
    %c0_48 = arith.constant 0 : index
    %77 = vector.load %arg12[%c0_47, %c0_48] : memref<32x16xf32, #tpu.memory_space<vmem>>, vector<32x16xf32>
    %cst_49 = arith.constant dense<0.000000e+00> : vector<1x16xf32>
    %78 = tpu.matmul %75, %77, %cst_49 {dimension_numbers = #tpu.dot_dimension_numbers<[1], [0], [0], [1], [0, 0, 1, 1], [], []>} : vector<1x32xf32>, vector<32x16xf32>, vector<1x16xf32> -> vector<1x16xf32>
    %c0_50 = arith.constant 0 : index
    %c0_51 = arith.constant 0 : index
    %79 = vector.load %arg13[%c0_50, %c0_51] : memref<1x16xf32, #tpu.memory_space<vmem>>, vector<1x16xf32>
    %80 = arith.addf %78, %79 : vector<1x16xf32>
    %cst_52 = arith.constant dense<0xFF800000> : vector<1xf32>
    %81 = vector.multi_reduction <maximumf>, %80, %cst_52 [1] : vector<1x16xf32> to vector<1xf32>
    %82 = vector.shape_cast %81 : vector<1xf32> to vector<1x1xf32>
    %83 = vector.broadcast %82 : vector<1x1xf32> to vector<1x16xf32>
    %84 = arith.subf %80, %83 : vector<1x16xf32>
    %85 = math.exp %84 : vector<1x16xf32>
    %cst_53 = arith.constant dense<0.000000e+00> : vector<1xf32>
    %86 = vector.multi_reduction <add>, %85, %cst_53 [1] : vector<1x16xf32> to vector<1xf32>
    %87 = vector.shape_cast %86 : vector<1xf32> to vector<1x1xf32>
    %88 = math.log %87 : vector<1x1xf32>
    %89 = vector.broadcast %88 : vector<1x1xf32> to vector<1x16xf32>
    %90 = arith.subf %84, %89 : vector<1x16xf32>
    %c0_54 = arith.constant 0 : index
    %c0_55 = arith.constant 0 : index
    %91 = vector.load %arg14[%c0_54, %c0_55] : memref<1x16xf32, #tpu.memory_space<vmem>>, vector<1x16xf32>
    tpu.vector_store %arg14[%c0_54, %c0_55], %90 {strides = array<i32>} : memref<1x16xf32, #tpu.memory_space<vmem>>, vector<1x16xf32>,
    return
  }
}

</mosaic_0001>

<llo_original>
// kernel: tpu_custom_call.1
$region0: #{tpu_custom_call.1}
  #allocation0 [shape = 'u32[]', space=smem, size = 0x4, offset = 0x4, fixed_abs, tag = 'smem constant byte address 0x4 - core index']
  #allocation1 [shape = 'u32[72,128]{1,0:T(1,128)}', space=vmem, size = 0x9000, scoped, tag = 'internal scratch']
  #allocation2 [shape = 'f32[1,64]{1,0:T(1,128)}', space=vmem, size = 0x200, scoped, tag = 'scratch operand']
  #allocation3 [shape = 's32[1]{0:T(128)S(6)}', space=smem, size = 0x200, scoped, tag = 'scoped memory for tpu_custom_call.1']
  %s0 = inlined_call_operand.<no memory space> [shape: s32[1], index: 0, kind: input, shape index: {}]
  %s1 = inlined_call_operand.hbm [shape: f32[1,32], index: 1, kind: input, shape index: {}]
  %s2 = inlined_call_operand.vmem [shape: f32[8,32], index: 2, kind: input, shape index: {}]
  %s3 = inlined_call_operand.vmem [shape: f32[16,32], index: 3, kind: input, shape index: {}]
  %s4 = inlined_call_operand.vmem [shape: f32[32,32], index: 4, kind: input, shape index: {}]
  %s5 = inlined_call_operand.hbm [shape: f32[32,32], index: 5, kind: input, shape index: {}]
  %s6 = inlined_call_operand.hbm [shape: f32[1,32], index: 6, kind: input, shape index: {}]
  %s7 = inlined_call_operand.hbm [shape: f32[1,32], index: 7, kind: input, shape index: {}]
  %s8 = inlined_call_operand.vmem [shape: f32[64,32], index: 8, kind: input, shape index: {}]
  %s9 = inlined_call_operand.vmem [shape: f32[1,32], index: 9, kind: input, shape index: {}]
  %s10 = inlined_call_operand.vmem [shape: f32[64,128], index: 10, kind: input, shape index: {}]
  %s11 = inlined_call_operand.vmem [shape: f32[1,128], index: 11, kind: input, shape index: {}]
  %s12 = inlined_call_operand.vmem [shape: f32[32,16], index: 12, kind: input, shape index: {}]
  %s13 = inlined_call_operand.vmem [shape: f32[1,16], index: 13, kind: input, shape index: {}]
  %s14 = inlined_call_operand.hbm [shape: f32[1,16], index: 14, kind: output, shape index: {0}]
  %s15 = inlined_call_operand.hbm [shape: f32[1,32], index: 15, kind: output, shape index: {1}]
  %16 = xla_tuple %s14, %s15
  %s17 = sld [smem:[#allocation0]]
  $region90: #{tpu_custom_call.1} parent=0
    _
  %s19 = ssub.s32 1, %s17
  %s20 = scalar_select 0, %s19, %s17
  %21 = sst [smem:[#allocation3]] %s0
  $region1: #{tpu_custom_call.1} parent=0
    #allocation4 [shape = 'u8[512]{0}', space=vmem, size = 0x400, scoped, tag = 'input window, operand 1, single buffered']
    #allocation5 [shape = 's32[1]{0}', space=sflag, size = 0x4, scoped, tag = 'scoped memory for tpu_custom_call.1']
    #allocation6 [shape = 's32[1]{0}', space=sflag, size = 0x4, scoped, tag = 'scoped memory for tpu_custom_call.1']
    #allocation7 [shape = 'u8[16384]{0}', space=vmem, size = 0x4000, scoped, tag = 'input window, operand 5, single buffered']
    #allocation8 [shape = 's32[1]{0}', space=sflag, size = 0x4, scoped, tag = 'scoped memory for tpu_custom_call.1']
    #allocation9 [shape = 'u8[512]{0}', space=vmem, size = 0x400, scoped, tag = 'input window, operand 6, single buffered']
    #allocation10 [shape = 'u8[512]{0}', space=vmem, size = 0x400, scoped, tag = 'input window, operand 7, single buffered']
    #allocation11 [shape = 's32[1]{0}', space=sflag, size = 0x4, scoped, tag = 'scoped memory for tpu_custom_call.1']
    #allocation12 [shape = 'u8[512]{0}', space=vmem, size = 0x400, scoped, tag = 'output window, operand 0, single buffered']
    #allocation13 [shape = 'u8[512]{0}', space=vmem, size = 0x400, scoped, tag = 'output window, operand 1, single buffered']
    #allocation14 [shape = 's32[1]{0}', space=sflag, size = 0x4, scoped, tag = 'scoped memory for tpu_custom_call.1']
    %22 = vsyncpa [#allocation5], 0
    %23 = vsyncpa [#allocation8], 0
    %24 = vsyncpa [#allocation11], 0
    %25 = vsyncpa [#allocation6], 0
    %26 = vsyncpa [#allocation14], 0
    // Predicated region
    $region2: #{tpu_custom_call.1} parent=1 // pred_check
      _
    $region3: #{tpu_custom_call.1} parent=1 // pred_check_branch
      %28 = sbr.rel (0) target = $region5
    $region4: #{tpu_custom_call.1} parent=1 // pred_region
      _
    $region5: #{tpu_custom_call.1} parent=1 // pred_fallthru
      _
    // Predicated region
    $region6: #{tpu_custom_call.1} parent=1 // pred_check
      _
    $region7: #{tpu_custom_call.1} parent=1 // pred_check_branch
      %30 = sbr.rel (0) target = $region9
    $region8: #{tpu_custom_call.1} parent=1 // pred_region
      %32 = vsyncadd [#allocation5], 0
      %s34 = sshll.u32 %s1, 4
      %s35 = int_to_ptr.hbm [resolvable:$true] %s34
      %s36 = sshll.u32 [#allocation4], 4
      %s37 = int_to_ptr.vmem [resolvable:$true] %s36
      %39 = dma.hbm_to_vmem [thread:$0]  %s35, 16, %s37, [#allocation5]
    $region9: #{tpu_custom_call.1} parent=1 // pred_fallthru
      _
    // Predicated region
    $region10: #{tpu_custom_call.1} parent=1 // pred_check
      _
    $region11: #{tpu_custom_call.1} parent=1 // pred_check_branch
      %41 = sbr.rel (0) target = $region13
    $region12: #{tpu_custom_call.1} parent=1 // pred_region
      _
    $region13: #{tpu_custom_call.1} parent=1 // pred_fallthru
      _
    // Predicated region
    $region14: #{tpu_custom_call.1} parent=1 // pred_check
      _
    $region15: #{tpu_custom_call.1} parent=1 // pred_check_branch
      %43 = sbr.rel (0) target = $region17
    $region16: #{tpu_custom_call.1} parent=1 // pred_region
      _
    $region17: #{tpu_custom_call.1} parent=1 // pred_fallthru
      _
    // Predicated region
    $region18: #{tpu_custom_call.1} parent=1 // pred_check
      _
    $region19: #{tpu_custom_call.1} parent=1 // pred_check_branch
      %45 = sbr.rel (0) target = $region21
    $region20: #{tpu_custom_call.1} parent=1 // pred_region
      _
    $region21: #{tpu_custom_call.1} parent=1 // pred_fallthru
      _
    // Predicated region
    $region22: #{tpu_custom_call.1} parent=1 // pred_check
      _
    $region23: #{tpu_custom_call.1} parent=1 // pred_check_branch
      %47 = sbr.rel (0) target = $region25
    $region24: #{tpu_custom_call.1} parent=1 // pred_region
      %49 = vsyncadd [#allocation8], 0
      %s50 = sshll.u32 %s5, 4
      %s51 = int_to_ptr.hbm [resolvable:$true] %s50
      %s52 = sshll.u32 [#allocation7], 4
      %s53 = int_to_ptr.vmem [resolvable:$true] %s52
      %58 = dma.hbm_to_vmem [thread:$0]  %s51, 512, %s53, [#allocation8], 128, 128, 8
    $region25: #{tpu_custom_call.1} parent=1 // pred_fallthru
      _
    // Predicated region
    $region26: #{tpu_custom_call.1} parent=1 // pred_check
      _
    $region27: #{tpu_custom_call.1} parent=1 // pred_check_branch
      %60 = sbr.rel (0) target = $region29
    $region28: #{tpu_custom_call.1} parent=1 // pred_region
      %62 = vsyncadd [#allocation8], 0
      %s64 = sshll.u32 %s6, 4
      %s65 = int_to_ptr.hbm [resolvable:$true] %s64
      %s66 = sshll.u32 [#allocation9], 4
      %s67 = int_to_ptr.vmem [resolvable:$true] %s66
      %69 = dma.hbm_to_vmem [thread:$0]  %s65, 16, %s67, [#allocation8]
    $region29: #{tpu_custom_call.1} parent=1 // pred_fallthru
      _
    // Predicated region
    $region30: #{tpu_custom_call.1} parent=1 // pred_check
      _
    $region31: #{tpu_custom_call.1} parent=1 // pred_check_branch
      %71 = sbr.rel (0) target = $region33
    $region32: #{tpu_custom_call.1} parent=1 // pred_region
      %73 = vsyncadd [#allocation11], 0
      %s75 = sshll.u32 %s7, 4
      %s76 = int_to_ptr.hbm [resolvable:$true] %s75
      %s77 = sshll.u32 [#allocation10], 4
      %s78 = int_to_ptr.vmem [resolvable:$true] %s77
      %80 = dma.hbm_to_vmem [thread:$0]  %s76, 16, %s78, [#allocation11]
    $region33: #{tpu_custom_call.1} parent=1 // pred_fallthru
      _
    // Predicated region
    $region34: #{tpu_custom_call.1} parent=1 // pred_check
      _
    $region35: #{tpu_custom_call.1} parent=1 // pred_check_branch
      %82 = sbr.rel (0) target = $region37
    $region36: #{tpu_custom_call.1} parent=1 // pred_region
      _
    $region37: #{tpu_custom_call.1} parent=1 // pred_fallthru
      _
    // Predicated region
    $region38: #{tpu_custom_call.1} parent=1 // pred_check
      _
    $region39: #{tpu_custom_call.1} parent=1 // pred_check_branch
      %84 = sbr.rel (0) target = $region41
    $region40: #{tpu_custom_call.1} parent=1 // pred_region
      _
    $region41: #{tpu_custom_call.1} parent=1 // pred_fallthru
      _
    // Predicated region
    $region42: #{tpu_custom_call.1} parent=1 // pred_check
      _
    $region43: #{tpu_custom_call.1} parent=1 // pred_check_branch
      %86 = sbr.rel (0) target = $region45
    $region44: #{tpu_custom_call.1} parent=1 // pred_region
      _
    $region45: #{tpu_custom_call.1} parent=1 // pred_fallthru
      _
    // Predicated region
    $region46: #{tpu_custom_call.1} parent=1 // pred_check
      _
    $region47: #{tpu_custom_call.1} parent=1 // pred_check_branch
      %88 = sbr.rel (0) target = $region49
    $region48: #{tpu_custom_call.1} parent=1 // pred_region
      _
    $region49: #{tpu_custom_call.1} parent=1 // pred_fallthru
      _
    // Predicated region
    $region50: #{tpu_custom_call.1} parent=1 // pred_check
      _
    $region51: #{tpu_custom_call.1} parent=1 // pred_check_branch
      %90 = sbr.rel (0) target = $region53
    $region52: #{tpu_custom_call.1} parent=1 // pred_region
      _
    $region53: #{tpu_custom_call.1} parent=1 // pred_fallthru
      _
    // Predicated region
    $region54: #{tpu_custom_call.1} parent=1 // pred_check
      _
    $region55: #{tpu_custom_call.1} parent=1 // pred_check_branch
      %92 = sbr.rel (0) target = $region57
    $region56: #{tpu_custom_call.1} parent=1 // pred_region
      _
    $region57: #{tpu_custom_call.1} parent=1 // pred_fallthru
      _
    // Predicated region
    $region58: #{tpu_custom_call.1} parent=1 // pred_check
      _
    $region59: #{tpu_custom_call.1} parent=1 // pred_check_branch
      %94 = sbr.rel (0) target = $region61
    $region60: #{tpu_custom_call.1} parent=1 // pred_region
      %96 = dma.done [#allocation5], 16
    $region61: #{tpu_custom_call.1} parent=1 // pred_fallthru
      _
    // Predicated region
    $region62: #{tpu_custom_call.1} parent=1 // pred_check
      _
    $region63: #{tpu_custom_call.1} parent=1 // pred_check_branch
      %98 = sbr.rel (0) target = $region65
    $region64: #{tpu_custom_call.1} parent=1 // pred_region
      %100 = dma.done [#allocation8], 512
    $region65: #{tpu_custom_call.1} parent=1 // pred_fallthru
      _
    // Predicated region
    $region66: #{tpu_custom_call.1} parent=1 // pred_check
      _
    $region67: #{tpu_custom_call.1} parent=1 // pred_check_branch
      %102 = sbr.rel (0) target = $region69
    $region68: #{tpu_custom_call.1} parent=1 // pred_region
      %104 = dma.done [#allocation8], 16
    $region69: #{tpu_custom_call.1} parent=1 // pred_fallthru
      _
    // Predicated region
    $region70: #{tpu_custom_call.1} parent=1 // pred_check
      _
    $region71: #{tpu_custom_call.1} parent=1 // pred_check_branch
      %106 = sbr.rel (0) target = $region73
    $region72: #{tpu_custom_call.1} parent=1 // pred_region
      %108 = dma.done [#allocation11], 16
    $region73: #{tpu_custom_call.1} parent=1 // pred_fallthru
      _
    %s109 = sld [smem:[#allocation3]]
    %v110 = vld [vmem:[#allocation4] sm:$0x1]
    %v111 = vld [vmem:[%s2] sm:$0xff]
    %v112 = vlaneseq
    %v113 = vand.u32 %v112, 127
    %v114 = vstv %s109
    %vm115 = vcmp.eq.s32.totalorder %v113, %v114
    %v116 = vsel %vm115, 1, 0
    %v117 = vcvt.s32.f32 %v116
    %v118 = vld [vmem:[%s3] sm:$0xff]
    %v119 = vld [vmem:[%s3 + $0x8] sm:$0xff]
    %vm120 = vcmask 130048
    %v122 = vsel %vm120, %v117, 0
    %124 = vmatpush.msra.mxu0 0.0
    %125 = vmatpush.msra.mxu0 0.0
    %126 = vmatpush.msra.mxu0 0.0
    %127 = vmatpush.msra.mxu0 0.0
    %128 = vmatpush.msra.mxu0 0.0
    %129 = vmatpush.msra.mxu0 0.0
    %130 = vmatpush.msra.mxu0 0.0
    %131 = vmatpush.msra.mxu0 0.0
    %132 = vmatpush.msra.mxu0 0.0
    %133 = vmatpush.msra.mxu0 0.0
    %134 = vmatpush.msra.mxu0 0.0
    %135 = vmatpush.msra.mxu0 0.0
    %136 = vmatpush.msra.mxu0 0.0
    %137 = vmatpush.msra.mxu0 0.0
    %138 = vmatpush.msra.mxu0 %v119
    %139 = vmatpush.msra.mxu0 %v118
    %140 = vmatmul.f32.gmra.mxu0 %v122
    %v141 = vpop.f32.mrf.mxu0
    %v142 = vadd.f32 0.0, %v141
    %143 = vdwg.mxu0
    %v144 = vld [vmem:[%s4] sm:$0xff]
    %v145 = vld [vmem:[%s4 + $0x8] sm:$0xff]
    %v146 = vld [vmem:[%s4 + $0x10] sm:$0xff]
    %v147 = vld [vmem:[%s4 + $0x18] sm:$0xff]
    %vm148 = vcmask 261120
    %v150 = vsel %vm148, %v110, 0
    %152 = vmatpush.msra.mxu0 0.0
    %153 = vmatpush.msra.mxu0 0.0
    %154 = vmatpush.msra.mxu0 0.0
    %155 = vmatpush.msra.mxu0 0.0
    %156 = vmatpush.msra.mxu0 0.0
    %157 = vmatpush.msra.mxu0 0.0
    %158 = vmatpush.msra.mxu0 0.0
    %159 = vmatpush.msra.mxu0 0.0
    %160 = vmatpush.msra.mxu0 0.0
    %161 = vmatpush.msra.mxu0 0.0
    %162 = vmatpush.msra.mxu0 0.0
    %163 = vmatpush.msra.mxu0 0.0
    %164 = vmatpush.msra.mxu0 %v147
    %165 = vmatpush.msra.mxu0 %v146
    %166 = vmatpush.msra.mxu0 %v145
    %167 = vmatpush.msra.mxu0 %v144
    %168 = vmatmul.f32.gmra.mxu0 %v150
    %v169 = vpop.f32.mrf.mxu0
    %v170 = vadd.f32 0.0, %v169
    %171 = vdwg.mxu0
    %v172 = vld [vmem:[#allocation7] sm:$0xff]
    %v173 = vld [vmem:[#allocation7 + $0x8] sm:$0xff]
    %v174 = vld [vmem:[#allocation7 + $0x10] sm:$0xff]
    %v175 = vld [vmem:[#allocation7 + $0x18] sm:$0xff]
    %v177 = vsel %vm148, %v111, 0
    %179 = vmatpush.msra.mxu0 0.0
    %180 = vmatpush.msra.mxu0 0.0
    %181 = vmatpush.msra.mxu0 0.0
    %182 = vmatpush.msra.mxu0 0.0
    %183 = vmatpush.msra.mxu0 0.0
    %184 = vmatpush.msra.mxu0 0.0
    %185 = vmatpush.msra.mxu0 0.0
    %186 = vmatpush.msra.mxu0 0.0
    %187 = vmatpush.msra.mxu0 0.0
    %188 = vmatpush.msra.mxu0 0.0
    %189 = vmatpush.msra.mxu0 0.0
    %190 = vmatpush.msra.mxu0 0.0
    %191 = vmatpush.msra.mxu0 %v175
    %192 = vmatpush.msra.mxu0 %v174
    %193 = vmatpush.msra.mxu0 %v173
    %194 = vmatpush.msra.mxu0 %v172
    %195 = vmatmul.f32.gmra.mxu0 %v177
    %v196 = vpop.f32.mrf.mxu0
    %v197 = vadd.f32 0.0, %v196
    %198 = vdwg.mxu0
    %v199 = vperm.slane %v170, 0
    %v200 = vadd.f32 %v199, %v197
    %v201 = vld [vmem:[#allocation9] sm:$0x1]
    %v203 = vperm.slane %v201, 0
    %v205 = vadd.f32 %v200, %v203
    %v206 = vtanh.pop %v205
    %v207 = vld [vmem:[#allocation10] sm:$0x1]
    %v209 = vperm.slane %v207, 0
    %v211 = vmul.f32 %v206, %v209
    %v212 = vsel %vm148, %v211, 0.0
    %213 = vadd.xlane.f32.xlu0 %v212
    %v214 = vpop.xlane.xlu0 %213
    %v215 = vrot.slane %v214, 4
    %v216 = vmax.f32 %v214, %v215
    %v217 = vrot.slane %v216, 2
    %v218 = vmax.f32 %v216, %v217
    %v219 = vrot.slane %v218, 1
    %v220 = vmax.f32 %v218, %v219
    %v221 = vsub.f32 %v214, %v220
    %v222 = vmul.f32 %v221, 1.442695
    %v223 = vpow.pop %v222
    %v224 = vrot.slane %v223, 4
    %v225 = vadd.f32 %v223, %v224
    %v226 = vrot.slane %v225, 2
    %v227 = vadd.f32 %v225, %v226
    %v228 = vrot.slane %v227, 1
    %v229 = vadd.f32 %v227, %v228
    %v230 = vrcp.pop %v229
    %v231 = vmul.f32 %v229, %v230
    %v232 = vsub.f32 1.0, %v231
    %v233 = vmul.f32 %v230, %v232
    %v234 = vadd.f32 %v230, %v233
    %vm235 = vweird.f32 %v229
    %vm236 = vweird.f32 %v230
    %vm237 = vmor %vm235, %vm236
    %v238 = vsel %vm237, %v230, %v234
    %v239 = vand.u32 2147483647, %v229
    %vm240 = vcmp.eq.f32.partialorder %v239, 8.507059e+37
    %v241 = vand.u32 %v229, 2147483648
    %v242 = vor.u32 1.1754944e-38, %v241
    %v243 = vsel %vm240, %v242, %v238
    %v244 = vmul.f32 %v223, %v243
    %v245 = vmul.f32 %v244, %v111
    %v246 = vsel %vm148, %v245, 0.0
    %v247 = vrot.slane %v246, 4
    %v248 = vadd.f32 %v246, %v247
    %v249 = vrot.slane %v248, 2
    %v250 = vadd.f32 %v248, %v249
    %v251 = vrot.slane %v250, 1
    %v252 = vadd.f32 %v250, %v251
    %vm253 = vcmask 253952
    %254 = vst.msk [vmem:[#allocation2] sm:$0x1] %vm253, %v142
    %256 = vrot.lane.b32.xlu0 %v252, 32
    %v257 = vpop.permute.xlu0 %256
    %vm259 = vcmask 516352
    %260 = vst.msk [vmem:[#allocation2] sm:$0x1] %vm259, %v257
    %v261 = vld [vmem:[#allocation2] sm:$0x1]
    %v262 = vld [vmem:[%s8] sm:$0xff]
    %v263 = vld [vmem:[%s8 + $0x8] sm:$0xff]
    %v264 = vld [vmem:[%s8 + $0x10] sm:$0xff]
    %v265 = vld [vmem:[%s8 + $0x18] sm:$0xff]
    %v266 = vld [vmem:[%s8 + $0x20] sm:$0xff]
    %v267 = vld [vmem:[%s8 + $0x28] sm:$0xff]
    %v268 = vld [vmem:[%s8 + $0x30] sm:$0xff]
    %v269 = vld [vmem:[%s8 + $0x38] sm:$0xff]
    %v270 = vld [vmem:[%s9] sm:$0x1]
    %vm271 = vcmask 523264
    %v273 = vsel %vm271, %v261, 0
    %275 = vmatpush.msra.mxu0 0.0
    %276 = vmatpush.msra.mxu0 0.0
    %277 = vmatpush.msra.mxu0 0.0
    %278 = vmatpush.msra.mxu0 0.0
    %279 = vmatpush.msra.mxu0 0.0
    %280 = vmatpush.msra.mxu0 0.0
    %281 = vmatpush.msra.mxu0 0.0
    %282 = vmatpush.msra.mxu0 0.0
    %283 = vmatpush.msra.mxu0 %v269
    %284 = vmatpush.msra.mxu0 %v268
    %285 = vmatpush.msra.mxu0 %v267
    %286 = vmatpush.msra.mxu0 %v266
    %287 = vmatpush.msra.mxu0 %v265
    %288 = vmatpush.msra.mxu0 %v264
    %289 = vmatpush.msra.mxu0 %v263
    %290 = vmatpush.msra.mxu0 %v262
    %291 = vmatmul.f32.gmra.mxu0 %v273
    %v292 = vpop.f32.mrf.mxu0
    %v293 = vadd.f32 %v270, %v292
    %294 = vdwg.mxu0
    %v295 = vmax.f32 %v293, 0.0
    %296 = vst.msk [vmem:[#allocation2] sm:$0x1] %vm253, %v295
    %v297 = vperm.slane %v110, 0
    %298 = vrot.lane.b32.xlu0 %v297, 32
    %v299 = vpop.permute.xlu0 %298
    %301 = vst.msk [vmem:[#allocation2] sm:$0x1] %vm259, %v299
    %v302 = vld [vmem:[#allocation2] sm:$0x1]
    %v303 = vld [vmem:[%s10] sm:$0xff]
    %v304 = vld [vmem:[%s10 + $0x8] sm:$0xff]
    %v305 = vld [vmem:[%s10 + $0x10] sm:$0xff]
    %v306 = vld [vmem:[%s10 + $0x18] sm:$0xff]
    %v307 = vld [vmem:[%s10 + $0x20] sm:$0xff]
    %v308 = vld [vmem:[%s10 + $0x28] sm:$0xff]
    %v309 = vld [vmem:[%s10 + $0x30] sm:$0xff]
    %v310 = vld [vmem:[%s10 + $0x38] sm:$0xff]
    %v311 = vld [vmem:[%s11] sm:$0x1]
    %v313 = vsel %vm271, %v302, 0
    %315 = vmatpush.msra.mxu0 0.0
    %316 = vmatpush.msra.mxu0 0.0
    %317 = vmatpush.msra.mxu0 0.0
    %318 = vmatpush.msra.mxu0 0.0
    %319 = vmatpush.msra.mxu0 0.0
    %320 = vmatpush.msra.mxu0 0.0
    %321 = vmatpush.msra.mxu0 0.0
    %322 = vmatpush.msra.mxu0 0.0
    %323 = vmatpush.msra.mxu0 %v310
    %324 = vmatpush.msra.mxu0 %v309
    %325 = vmatpush.msra.mxu0 %v308
    %326 = vmatpush.msra.mxu0 %v307
    %327 = vmatpush.msra.mxu0 %v306
    %328 = vmatpush.msra.mxu0 %v305
    %329 = vmatpush.msra.mxu0 %v304
    %330 = vmatpush.msra.mxu0 %v303
    %331 = vmatmul.f32.gmra.mxu0 %v313
    %v332 = vpop.f32.mrf.mxu0
    %v333 = vadd.f32 %v311, %v332
    %334 = vdwg.mxu0
    %v335 = vxor.u32 %v333, 2147483648
    %v336 = vmul.f32 %v335, 1.442695
    %v337 = vpow.pop %v336
    %v338 = vadd.f32 %v337, 1.0
    %v339 = vrcp.pop %v338
    %v340 = vmul.f32 %v338, %v339
    %v341 = vsub.f32 1.0, %v340
    %v342 = vmul.f32 %v339, %v341
    %v343 = vadd.f32 %v339, %v342
    %vm344 = vweird.f32 %v338
    %vm345 = vweird.f32 %v339
    %vm346 = vmor %vm344, %vm345
    %v347 = vsel %vm346, %v339, %v343
    %v348 = vand.u32 2147483647, %v338
    %vm349 = vcmp.eq.f32.partialorder %v348, 8.507059e+37
    %v350 = vand.u32 %v338, 2147483648
    %v351 = vor.u32 1.1754944e-38, %v350
    %v352 = vsel %vm349, %v351, %v347
    %v353 = vmul.f32 1.0, %v352
    %355 = vrot.lane.b32.xlu0 %v333, 32
    %v356 = vpop.permute.xlu0 %355
    %v358 = vmul.f32 %v353, %v356
    %360 = vrot.lane.b32.xlu0 %v358, 64
    %v361 = vpop.permute.xlu0 %360
    %v363 = vadd.f32 %v333, %v361
    %v364 = vtanh.pop %v363
    %v365 = vsub.f32 1.0, %v353
    %367 = vrot.lane.b32.xlu0 %v364, 96
    %v368 = vpop.permute.xlu0 %367
    %v370 = vmul.f32 %v365, %v368
    %v371 = vmul.f32 %v353, %v299
    %v372 = vadd.f32 %v370, %v371
    %374 = vrot.lane.b32.xlu0 %v372, 96
    %v375 = vpop.permute.xlu0 %374
    %377 = vst.msk [vmem:[#allocation13] sm:$0x1] %vm253, %v375
    %v378 = vld [vmem:[%s12] sm:$0xff]
    %v379 = vld [vmem:[%s12 + $0x8] sm:$0xff]
    %v380 = vld [vmem:[%s12 + $0x10] sm:$0xff]
    %v381 = vld [vmem:[%s12 + $0x18] sm:$0xff]
    %v382 = vld [vmem:[%s13] sm:$0x1]
    %v383 = vsel %vm148, %v375, 0
    %385 = vmatpush.msra.mxu0 0.0
    %386 = vmatpush.msra.mxu0 0.0
    %387 = vmatpush.msra.mxu0 0.0
    %388 = vmatpush.msra.mxu0 0.0
    %389 = vmatpush.msra.mxu0 0.0
    %390 = vmatpush.msra.mxu0 0.0
    %391 = vmatpush.msra.mxu0 0.0
    %392 = vmatpush.msra.mxu0 0.0
    %393 = vmatpush.msra.mxu0 0.0
    %394 = vmatpush.msra.mxu0 0.0
    %395 = vmatpush.msra.mxu0 0.0
    %396 = vmatpush.msra.mxu0 0.0
    %397 = vmatpush.msra.mxu0 %v381
    %398 = vmatpush.msra.mxu0 %v380
    %399 = vmatpush.msra.mxu0 %v379
    %400 = vmatpush.msra.mxu0 %v378
    %401 = vmatmul.f32.gmra.mxu0 %v383
    %v402 = vpop.f32.mrf.mxu0
    %v403 = vadd.f32 %v382, %v402
    %404 = vdwg.mxu0
    %vm405 = vcmask 122880
    %v406 = vsel %vm405, %v403, -inf
    %407 = vmax.xlane.f32.xlu0 %v406
    %v408 = vpop.xlane.xlu0 %407
    %v409 = vsub.f32 %v403, %v408
    %v410 = vmul.f32 %v409, 1.442695
    %v411 = vpow.pop %v410
    %v412 = vsel %vm405, %v411, 0.0
    %413 = vadd.xlane.f32.xlu0 %v412
    %v414 = vpop.xlane.xlu0 %413
    %v415 = vlog2.pop %v414
    %v416 = vmul.f32 %v415, 0.6931472
    %v417 = vsub.f32 %v409, %v416
    %418 = vst.msk [vmem:[#allocation12] sm:$0x1] %vm405, %v417
    // Predicated region
    $region74: #{tpu_custom_call.1} parent=1 // pred_check
      _
    $region75: #{tpu_custom_call.1} parent=1 // pred_check_branch
      %420 = sbr.rel (0) target = $region77
    $region76: #{tpu_custom_call.1} parent=1 // pred_region
      %422 = vsyncadd [#allocation6], 0
      %s424 = sshll.u32 [#allocation12], 4
      %s425 = int_to_ptr.vmem [resolvable:$true] %s424
      %s426 = sshll.u32 %s14, 4
      %s427 = int_to_ptr.hbm [resolvable:$true] %s426
      %429 = dma.vmem_to_hbm [thread:$0]  %s425, 16, %s427, [#allocation6]
    $region77: #{tpu_custom_call.1} parent=1 // pred_fallthru
      _
    // Predicated region
    $region78: #{tpu_custom_call.1} parent=1 // pred_check
      _
    $region79: #{tpu_custom_call.1} parent=1 // pred_check_branch
      %431 = sbr.rel (0) target = $region81
    $region80: #{tpu_custom_call.1} parent=1 // pred_region
      %433 = vsyncadd [#allocation14], 0
      %s435 = sshll.u32 [#allocation13], 4
      %s436 = int_to_ptr.vmem [resolvable:$true] %s435
      %s437 = sshll.u32 %s15, 4
      %s438 = int_to_ptr.hbm [resolvable:$true] %s437
      %440 = dma.vmem_to_hbm [thread:$0]  %s436, 16, %s438, [#allocation14]
    $region81: #{tpu_custom_call.1} parent=1 // pred_fallthru
      _
    // Predicated region
    $region82: #{tpu_custom_call.1} parent=1 // pred_check
      _
    $region83: #{tpu_custom_call.1} parent=1 // pred_check_branch
      %442 = sbr.rel (0) target = $region85
    $region84: #{tpu_custom_call.1} parent=1 // pred_region
      %444 = dma.done [#allocation6], 16
    $region85: #{tpu_custom_call.1} parent=1 // pred_fallthru
      _
    // Predicated region
    $region86: #{tpu_custom_call.1} parent=1 // pred_check
      _
    $region87: #{tpu_custom_call.1} parent=1 // pred_check_branch
      %446 = sbr.rel (0) target = $region89
    $region88: #{tpu_custom_call.1} parent=1 // pred_region
      %448 = dma.done [#allocation14], 16
    $region89: #{tpu_custom_call.1} parent=1 // pred_fallthru
      _
    %449 = vsyncpa [#allocation5], 1
    %450 = vsyncpa [#allocation8], 1
    %451 = vsyncpa [#allocation11], 1
    %452 = vsyncpa [#allocation6], 1
    %453 = vsyncpa [#allocation14], 1

</llo_original>
